<compile_context>
chip_gen: v6e
topology: v6e:2x2x1
jax: 0.10.0
libtpu: 0.0.40
codegen_flags: <defaults>
</compile_context>

<pallas_src>
import functools
import math

import jax
import jax.numpy as jnp
import numpy as np
from jax.experimental import pallas as pl
from jax.experimental.pallas import tpu as pltpu

NEG_BIG = 1e30    # |log(0)| stand-in; sigmoid(-1e30) == 0, exp underflows to 0 in f32
LN_EPS = 1e-5     # torch.nn.LayerNorm default


def _layernorm(x, gamma, beta):
    mu = jnp.mean(x, axis=-1, keepdims=True)
    var = jnp.mean((x - mu) ** 2, axis=-1, keepdims=True)
    return (x - mu) * jax.lax.rsqrt(var + LN_EPS) * gamma + beta


def _reverse_inclusive_cumsum(x):
    """Inclusive reverse cumulative sum along the last axis.

    Hillis-Steele doubling scan (log2(L) shift+add steps); replaces the old
    [tq,T] x [T,T] MXU matmul against a VMEM-resident triangular constant.
    """
    length = x.shape[-1]
    acc = x
    n = 1
    while n < length:
        zeros = jnp.zeros(x.shape[:-1] + (n,), x.dtype)
        acc = acc + jnp.concatenate([acc[..., n:], zeros], axis=-1)
        n *= 2
    return acc


# --------------------------------------------------------------------------
# Kernel 1: CoPE attention (per batch / head / query tile)
# --------------------------------------------------------------------------
def cope_attention_kernel(q_ref, k_ref, v_ref, mask_ref, pos_emb_ref, out_ref,
                          *, npos_max, scale):
    q = q_ref[0, 0]          # [tq, dh] bf16 (un-scaled; CoPE logits need raw q)
    k = k_ref[0, 0]          # [T,  dh] bf16
    v = v_ref[0, 0]          # [T,  dh] bf16

    # QK^T: contract last dims directly (no explicit K^T relayout), f32 accum.
    scores = jax.lax.dot_general(
        q, k, (((1,), (1,)), ((), ())),
        preferred_element_type=jnp.float32) * scale                      # [tq, T]
    # log(mask) stand-in built arithmetically from the int8 mask.
    scores = scores + (mask_ref[0].astype(jnp.float32) - 1.0) * NEG_BIG

    # ---- CoPE positional bias ----
    gates = jax.nn.sigmoid(scores)                                       # [tq, T]
    pos = _reverse_inclusive_cumsum(gates)                               # f32 scan
    pos = jnp.minimum(pos, jnp.float32(npos_max - 1))

    # q @ pos_emb (pos_emb zero-padded to a full 128-lane width).
    logits = jnp.dot(q, pos_emb_ref[...],
                     preferred_element_type=jnp.float32)                 # [tq, npos_pad]

    # Interpolated gather via the telescoping identity (no floor/ceil/select loop).
    cope = logits[:, 0:1]
    for p in range(1, npos_max):
        d = logits[:, p:p + 1] - logits[:, p - 1:p]                      # [tq, 1]
        cope = cope + d * jnp.clip(pos - float(p - 1), 0.0, 1.0)
    scores = scores + cope

    # Softmax with EUP reciprocal instead of a divide.
    m = jnp.max(scores, axis=-1, keepdims=True)
    e = jnp.exp(scores - m)
    attn = e * pl.reciprocal(jnp.sum(e, axis=-1, keepdims=True), approx=True)

    out_ref[0, 0] = jnp.dot(attn.astype(jnp.bfloat16), v,
                            preferred_element_type=jnp.float32).astype(out_ref.dtype)


# --------------------------------------------------------------------------
# Kernel 2: out-projection + AddNorm + PosWiseFFN + AddNorm (per batch / q tile)
# --------------------------------------------------------------------------
def outproj_ffn_kernel(x_ref, a_ref, wo_ref, bo_ref, g1_ref, be1_ref,
                       w1_ref, b1_ref, w2_ref, b2_ref, g2_ref, be2_ref,
                       out_ref):
    x = x_ref[0]                                                          # [tq, D] f32 residual
    # single full-D out-projection (heads already concatenated), bf16 MXU inputs
    proj = jnp.dot(a_ref[0], wo_ref[...],
                   preferred_element_type=jnp.float32) + bo_ref[0]

    # AddNorm #1
    y = _layernorm(x + proj, g1_ref[0], be1_ref[0])

    # PosWiseFFN (Linear -> ReLU -> Linear) + AddNorm #2
    h1 = jnp.maximum(
        jnp.dot(y.astype(jnp.bfloat16), w1_ref[...],
                preferred_element_type=jnp.float32) + b1_ref[0], 0.0)
    h2 = jnp.dot(h1.astype(jnp.bfloat16), w2_ref[...],
                 preferred_element_type=jnp.float32) + b2_ref[0]
    out_ref[0] = _layernorm(y + h2, g2_ref[0], be2_ref[0]).astype(out_ref.dtype)


# --------------------------------------------------------------------------
# Wrapper
# --------------------------------------------------------------------------
def copeformer_forward(x, mask, params, *, nheads, npos_max, tq=None):
    B, T, D = x.shape
    dh = D // nheads
    hdims = params["w1"].shape[1]
    scale = 1.0 / math.sqrt(dh)

    if tq is None:
        if T <= 128:
            tq = T
        elif T % 256 == 0:
            tq = 256
        else:
            tq = 128
    assert T % tq == 0, "sequence length must be divisible by the query tile"
    nq = T // tq
    bf = jnp.bfloat16

    # Q/K/V projections once, outside the kernels (plain XLA matmuls, f32 accum),
    # then bf16 [B, H, T, dh] for head-indexed BlockSpecs.
    def project(w, b):
        y = x @ w + b[0]
        return y.reshape(B, T, nheads, dh).transpose(0, 2, 1, 3).astype(bf)

    q = project(params["wq"], params["bq"])
    k = project(params["wk"], params["bk"])
    v = project(params["wv"], params["bv"])

    mask_i8 = (mask > 0).astype(jnp.int8)

    # CoPE position embedding padded to a full 128-lane width (lane-dense logits).
    npos_pad = ((npos_max + 127) // 128) * 128
    pos_emb_p = jnp.pad(params["pos_emb"],
                        ((0, 0), (0, npos_pad - npos_max))).astype(bf)    # [dh, npos_pad]

    attn_kernel = functools.partial(cope_attention_kernel,
                                    npos_max=npos_max, scale=scale)

    # grid = (batch, head, q-tile): q-tile innermost so K/V blocks are only
    # re-fetched on a head change; every axis is parallel (no accumulator).
    attn_heads = pl.pallas_call(
        attn_kernel,
        out_shape=jax.ShapeDtypeStruct((B, nheads, T, dh), bf),
        grid=(B, nheads, nq),
        in_specs=[
            pl.BlockSpec((1, 1, tq, dh), lambda b, h, qi: (b, h, qi, 0)),  # Q tile
            pl.BlockSpec((1, 1, T, dh),  lambda b, h, qi: (b, h, 0, 0)),   # K (full seq)
            pl.BlockSpec((1, 1, T, dh),  lambda b, h, qi: (b, h, 0, 0)),   # V (full seq)
            pl.BlockSpec((1, tq, T),     lambda b, h, qi: (b, qi, 0)),     # mask tile (int8)
            pl.BlockSpec((dh, npos_pad), lambda b, h, qi: (0, 0)),         # cope pos_emb
        ],
        out_specs=pl.BlockSpec((1, 1, tq, dh), lambda b, h, qi: (b, h, qi, 0)),
        compiler_params=pltpu.CompilerParams(
            dimension_semantics=("parallel", "parallel", "parallel"),
            vmem_limit_bytes=48 * 1024 * 1024,
        ),
    )(q, k, v, mask_i8, pos_emb_p)

    # concat heads: [B, H, T, dh] -> [B, T, D] (bf16), feeds the out-projection.
    attn_cat = attn_heads.transpose(0, 2, 1, 3).reshape(B, T, D)

    # Out-projection + AddNorm + FFN + AddNorm in a separate pallas_call so the
    # FFN weights are not VMEM-resident during the attention steps.
    out = pl.pallas_call(
        outproj_ffn_kernel,
        out_shape=jax.ShapeDtypeStruct((B, T, D), jnp.float32),
        grid=(B, nq),
        in_specs=[
            pl.BlockSpec((1, tq, D), lambda b, qi: (b, qi, 0)),   # residual x (f32)
            pl.BlockSpec((1, tq, D), lambda b, qi: (b, qi, 0)),   # concat attn out (bf16)
            pl.BlockSpec((D, D),     lambda b, qi: (0, 0)),       # wo
            pl.BlockSpec((1, D),     lambda b, qi: (0, 0)),       # bo
            pl.BlockSpec((1, D),     lambda b, qi: (0, 0)),       # ln1 gamma
            pl.BlockSpec((1, D),     lambda b, qi: (0, 0)),       # ln1 beta
            pl.BlockSpec((D, hdims), lambda b, qi: (0, 0)),       # ffn w1
            pl.BlockSpec((1, hdims), lambda b, qi: (0, 0)),       # ffn b1
            pl.BlockSpec((hdims, D), lambda b, qi: (0, 0)),       # ffn w2
            pl.BlockSpec((1, D),     lambda b, qi: (0, 0)),       # ffn b2
            pl.BlockSpec((1, D),     lambda b, qi: (0, 0)),       # ln2 gamma
            pl.BlockSpec((1, D),     lambda b, qi: (0, 0)),       # ln2 beta
        ],
        out_specs=pl.BlockSpec((1, tq, D), lambda b, qi: (b, qi, 0)),
        compiler_params=pltpu.CompilerParams(
            dimension_semantics=("parallel", "parallel"),
            vmem_limit_bytes=48 * 1024 * 1024,
        ),
    )(x, attn_cat,
      params["wo"].astype(bf), params["bo"],
      params["g1"], params["be1"],
      params["w1"].astype(bf), params["b1"],
      params["w2"].astype(bf), params["b2"],
      params["g2"], params["be2"])

    return out


# --------------------------------------------------------------------------
# Pure-JAX f32 reference mirroring the PyTorch semantics (for validation)
# --------------------------------------------------------------------------
def copeformer_reference(x, mask, params, *, nheads, npos_max):
    B, T, D = x.shape
    dh = D // nheads
    q = x @ params["wq"] + params["bq"][0]
    k = x @ params["wk"] + params["bk"][0]
    v = x @ params["wv"] + params["bv"][0]

    def heads(t):
        return t.reshape(B, T, nheads, dh).transpose(0, 2, 1, 3)  # [B, H, T, dh]

    qh, kh, vh = heads(q), heads(k), heads(v)
    scores = jnp.einsum("bhqd,bhkd->bhqk", qh, kh) / math.sqrt(dh)
    scores = scores + jnp.where(mask[:, None] > 0, 0.0, -NEG_BIG)

    gates = jax.nn.sigmoid(scores)
    pos = jnp.flip(jnp.cumsum(jnp.flip(gates, -1), axis=-1), -1)
    pos = jnp.minimum(pos, npos_max - 1)
    pf, pc = jnp.floor(pos), jnp.ceil(pos)
    w = pos - pf
    logits_int = jnp.einsum("bhqd,dp->bhqp", qh, params["pos_emb"])
    lf = jnp.take_along_axis(logits_int, pf.astype(jnp.int32), axis=-1)
    lc = jnp.take_along_axis(logits_int, pc.astype(jnp.int32), axis=-1)
    scores = scores + lc * w + lf * (1.0 - w)

    attn = jax.nn.softmax(scores, axis=-1)
    out = jnp.einsum("bhqk,bhkd->bhqd", attn, vh).transpose(0, 2, 1, 3).reshape(B, T, D)
    out = out @ params["wo"] + params["bo"][0]

    y = _layernorm(x + out, params["g1"][0], params["be1"][0])
    h1 = jnp.maximum(y @ params["w1"] + params["b1"][0], 0.0)
    h2 = h1 @ params["w2"] + params["b2"][0]
    return _layernorm(y + h2, params["g2"][0], params["be2"][0])


def init_params(key, idims, hdims, nheads, npos_max):
    dh = idims // nheads
    ks = jax.random.split(key, 10)
    s_d = 1.0 / math.sqrt(idims)
    s_h = 1.0 / math.sqrt(hdims)
    return {
        "wq": jax.random.normal(ks[0], (idims, idims), jnp.float32) * s_d,
        "bq": jnp.zeros((1, idims), jnp.float32),
        "wk": jax.random.normal(ks[1], (idims, idims), jnp.float32) * s_d,
        "bk": jnp.zeros((1, idims), jnp.float32),
        "wv": jax.random.normal(ks[2], (idims, idims), jnp.float32) * s_d,
        "bv": jnp.zeros((1, idims), jnp.float32),
        "wo": jax.random.normal(ks[3], (idims, idims), jnp.float32) * s_d,
        "bo": jax.random.normal(ks[4], (1, idims), jnp.float32) * 0.01,
        "pos_emb": jax.random.normal(ks[5], (dh, npos_max), jnp.float32) * 0.1,
        "g1": jnp.ones((1, idims), jnp.float32),
        "be1": jnp.zeros((1, idims), jnp.float32),
        "w1": jax.random.normal(ks[6], (idims, hdims), jnp.float32) * s_d,
        "b1": jax.random.normal(ks[7], (1, hdims), jnp.float32) * 0.01,
        "w2": jax.random.normal(ks[8], (hdims, idims), jnp.float32) * s_h,
        "b2": jax.random.normal(ks[9], (1, idims), jnp.float32) * 0.01,
        "g2": jnp.ones((1, idims), jnp.float32),
        "be2": jnp.zeros((1, idims), jnp.float32),
    }


if __name__ == "__main__":
    B, T = 2, 8
    idims, hdims, nheads, npos_max = 32, 64, 4, 8

    key = jax.random.PRNGKey(0)
    k_x, k_p = jax.random.split(key)
    x = jax.random.normal(k_x, (B, T, idims), jnp.float32)
    # causal mask: 1.0 = attend, 0.0 = masked
    mask = jnp.broadcast_to(jnp.tril(jnp.ones((T, T), jnp.float32)), (B, T, T))
    params = init_params(k_p, idims, hdims, nheads, npos_max)

    out = copeformer_forward(x, mask, params, nheads=nheads, npos_max=npos_max)
    out = jax.block_until_ready(out)

    ref = jax.block_until_ready(
        copeformer_reference(x, mask, params, nheads=nheads, npos_max=npos_max))

    # Tolerance accommodates bf16 matmul inputs (f32 accumulation) vs the f32 reference.
    np.testing.assert_allclose(np.asarray(out), np.asarray(ref), rtol=5e-2, atol=5e-2)
    print("KERNEL_OK")
</pallas_src>

<mosaic_0001>
module attributes {stable_mosaic.version = 11 : i64} {
  func.func @cope_attention_kernel(%arg0: i32, %arg1: i32, %arg2: i32, %arg3: memref<1x1x8x8xbf16, #tpu.memory_space<vmem>>, %arg4: memref<1x1x8x8xbf16, #tpu.memory_space<vmem>>, %arg5: memref<1x1x8x8xbf16, #tpu.memory_space<vmem>>, %arg6: memref<1x8x8xi8, #tpu.memory_space<vmem>>, %arg7: memref<8x128xbf16, #tpu.memory_space<vmem>>, %arg8: memref<1x1x8x8xbf16, #tpu.memory_space<vmem>>) attributes {dimension_semantics = [#tpu.dimension_semantics<parallel>, #tpu.dimension_semantics<parallel>, #tpu.dimension_semantics<parallel>], iteration_bounds = array<i64: 2, 4, 1>, scalar_prefetch = 0 : i64, scratch_operands = 0 : i64, tpu.core_type = #tpu.core_type<tc>, window_params = [{transform_indices = @transform_0, window_bounds = array<i64: 1, 1, 8, 8>}, {transform_indices = @transform_1, window_bounds = array<i64: 1, 1, 8, 8>}, {transform_indices = @transform_2, window_bounds = array<i64: 1, 1, 8, 8>}, {transform_indices = @transform_3, window_bounds = array<i64: 1, 8, 8>}, {pipeline_mode = #tpu.pipeline_mode<synchronous>, transform_indices = @transform_4, window_bounds = array<i64: 8, 128>}, {transform_indices = @transform_5, window_bounds = array<i64: 1, 1, 8, 8>}]} {
    %c0 = arith.constant 0 : index
    %c0_0 = arith.constant 0 : index
    %c0_1 = arith.constant 0 : index
    %c0_2 = arith.constant 0 : index
    %0 = vector.load %arg3[%c0, %c0_0, %c0_1, %c0_2] : memref<1x1x8x8xbf16, #tpu.memory_space<vmem>>, vector<1x1x8x8xbf16>
    %1 = vector.shape_cast %0 : vector<1x1x8x8xbf16> to vector<8x8xbf16>
    %c0_3 = arith.constant 0 : index
    %c0_4 = arith.constant 0 : index
    %c0_5 = arith.constant 0 : index
    %c0_6 = arith.constant 0 : index
    %2 = vector.load %arg4[%c0_3, %c0_4, %c0_5, %c0_6] : memref<1x1x8x8xbf16, #tpu.memory_space<vmem>>, vector<1x1x8x8xbf16>
    %3 = vector.shape_cast %2 : vector<1x1x8x8xbf16> to vector<8x8xbf16>
    %c0_7 = arith.constant 0 : index
    %c0_8 = arith.constant 0 : index
    %c0_9 = arith.constant 0 : index
    %c0_10 = arith.constant 0 : index
    %4 = vector.load %arg5[%c0_7, %c0_8, %c0_9, %c0_10] : memref<1x1x8x8xbf16, #tpu.memory_space<vmem>>, vector<1x1x8x8xbf16>
    %5 = vector.shape_cast %4 : vector<1x1x8x8xbf16> to vector<8x8xbf16>
    %cst = arith.constant dense<0.000000e+00> : vector<8x8xf32>
    %6 = tpu.matmul %1, %3, %cst {dimension_numbers = #tpu.dot_dimension_numbers<[1], [1], [0], [0], [0, 0, 1, 0], [], []>} : vector<8x8xbf16>, vector<8x8xbf16>, vector<8x8xf32> -> vector<8x8xf32>
    %cst_11 = arith.constant 0.353553385 : f32
    %7 = vector.broadcast %cst_11 : f32 to vector<8x8xf32>
    %8 = arith.mulf %6, %7 : vector<8x8xf32>
    %c0_12 = arith.constant 0 : index
    %c0_13 = arith.constant 0 : index
    %c0_14 = arith.constant 0 : index
    %9 = vector.load %arg6[%c0_12, %c0_13, %c0_14] : memref<1x8x8xi8, #tpu.memory_space<vmem>>, vector<1x8x8xi8>
    %10 = vector.shape_cast %9 : vector<1x8x8xi8> to vector<8x8xi8>
    %11 = arith.sitofp %10 : vector<8x8xi8> to vector<8x8xf32>
    %cst_15 = arith.constant 1.000000e+00 : f32
    %12 = vector.broadcast %cst_15 : f32 to vector<8x8xf32>
    %13 = arith.subf %11, %12 : vector<8x8xf32>
    %cst_16 = arith.constant 1.000000e+30 : f32
    %14 = vector.broadcast %cst_16 : f32 to vector<8x8xf32>
    %15 = arith.mulf %13, %14 : vector<8x8xf32>
    %16 = arith.addf %8, %15 : vector<8x8xf32>
    %17 = arith.negf %16 : vector<8x8xf32>
    %18 = math.exp %17 : vector<8x8xf32>
    %cst_17 = arith.constant 1.000000e+00 : f32
    %19 = vector.broadcast %cst_17 : f32 to vector<8x8xf32>
    %20 = arith.addf %19, %18 : vector<8x8xf32>
    %21 = arith.divf %19, %20 : vector<8x8xf32>
    %cst_18 = arith.constant 0.000000e+00 : f32
    %22 = vector.broadcast %cst_18 : f32 to vector<8x1xf32>
    %23 = vector.extract_strided_slice %21 {offsets = [0, 1], sizes = [8, 7], strides = [1, 1]} : vector<8x8xf32> to vector<8x7xf32>
    %24 = tpu.concatenate %23, %22 in 1 : vector<8x7xf32>, vector<8x1xf32> -> vector<8x8xf32>
    %25 = arith.addf %21, %24 : vector<8x8xf32>
    %cst_19 = arith.constant 0.000000e+00 : f32
    %26 = vector.broadcast %cst_19 : f32 to vector<8x2xf32>
    %27 = vector.extract_strided_slice %25 {offsets = [0, 2], sizes = [8, 6], strides = [1, 1]} : vector<8x8xf32> to vector<8x6xf32>
    %28 = tpu.concatenate %27, %26 in 1 : vector<8x6xf32>, vector<8x2xf32> -> vector<8x8xf32>
    %29 = arith.addf %25, %28 : vector<8x8xf32>
    %cst_20 = arith.constant 0.000000e+00 : f32
    %30 = vector.broadcast %cst_20 : f32 to vector<8x4xf32>
    %31 = vector.extract_strided_slice %29 {offsets = [0, 4], sizes = [8, 4], strides = [1, 1]} : vector<8x8xf32> to vector<8x4xf32>
    %32 = tpu.concatenate %31, %30 in 1 : vector<8x4xf32>, vector<8x4xf32> -> vector<8x8xf32>
    %33 = arith.addf %29, %32 : vector<8x8xf32>
    %cst_21 = arith.constant 7.000000e+00 : f32
    %34 = vector.broadcast %cst_21 : f32 to vector<8x8xf32>
    %35 = arith.minimumf %33, %34 : vector<8x8xf32>
    %c0_22 = arith.constant 0 : index
    %c0_23 = arith.constant 0 : index
    %36 = vector.load %arg7[%c0_22, %c0_23] : memref<8x128xbf16, #tpu.memory_space<vmem>>, vector<8x128xbf16>
    %cst_24 = arith.constant dense<0.000000e+00> : vector<8x128xf32>
    %37 = tpu.matmul %1, %36, %cst_24 {dimension_numbers = #tpu.dot_dimension_numbers<[1], [0], [0], [1], [0, 0, 1, 1], [], []>} : vector<8x8xbf16>, vector<8x128xbf16>, vector<8x128xf32> -> vector<8x128xf32>
    %38 = vector.extract_strided_slice %37 {offsets = [0, 0], sizes = [8, 1], strides = [1, 1]} : vector<8x128xf32> to vector<8x1xf32>
    %39 = vector.extract_strided_slice %37 {offsets = [0, 1], sizes = [8, 1], strides = [1, 1]} : vector<8x128xf32> to vector<8x1xf32>
    %40 = vector.extract_strided_slice %37 {offsets = [0, 0], sizes = [8, 1], strides = [1, 1]} : vector<8x128xf32> to vector<8x1xf32>
    %41 = arith.subf %39, %40 : vector<8x1xf32>
    %cst_25 = arith.constant 0.000000e+00 : f32
    %42 = vector.broadcast %cst_25 : f32 to vector<8x8xf32>
    %43 = arith.subf %35, %42 : vector<8x8xf32>
    %cst_26 = arith.constant 0.000000e+00 : f32
    %cst_27 = arith.constant 1.000000e+00 : f32
    %44 = vector.broadcast %cst_26 : f32 to vector<8x8xf32>
    %45 = arith.maximumf %44, %43 : vector<8x8xf32>
    %46 = vector.broadcast %cst_27 : f32 to vector<8x8xf32>
    %47 = arith.minimumf %46, %45 : vector<8x8xf32>
    %48 = vector.broadcast %41 : vector<8x1xf32> to vector<8x8xf32>
    %49 = arith.mulf %48, %47 : vector<8x8xf32>
    %50 = vector.broadcast %38 : vector<8x1xf32> to vector<8x8xf32>
    %51 = arith.addf %50, %49 : vector<8x8xf32>
    %52 = vector.extract_strided_slice %37 {offsets = [0, 2], sizes = [8, 1], strides = [1, 1]} : vector<8x128xf32> to vector<8x1xf32>
    %53 = vector.extract_strided_slice %37 {offsets = [0, 1], sizes = [8, 1], strides = [1, 1]} : vector<8x128xf32> to vector<8x1xf32>
    %54 = arith.subf %52, %53 : vector<8x1xf32>
    %cst_28 = arith.constant 1.000000e+00 : f32
    %55 = vector.broadcast %cst_28 : f32 to vector<8x8xf32>
    %56 = arith.subf %35, %55 : vector<8x8xf32>
    %cst_29 = arith.constant 0.000000e+00 : f32
    %cst_30 = arith.constant 1.000000e+00 : f32
    %57 = vector.broadcast %cst_29 : f32 to vector<8x8xf32>
    %58 = arith.maximumf %57, %56 : vector<8x8xf32>
    %59 = vector.broadcast %cst_30 : f32 to vector<8x8xf32>
    %60 = arith.minimumf %59, %58 : vector<8x8xf32>
    %61 = vector.broadcast %54 : vector<8x1xf32> to vector<8x8xf32>
    %62 = arith.mulf %61, %60 : vector<8x8xf32>
    %63 = arith.addf %51, %62 : vector<8x8xf32>
    %64 = vector.extract_strided_slice %37 {offsets = [0, 3], sizes = [8, 1], strides = [1, 1]} : vector<8x128xf32> to vector<8x1xf32>
    %65 = vector.extract_strided_slice %37 {offsets = [0, 2], sizes = [8, 1], strides = [1, 1]} : vector<8x128xf32> to vector<8x1xf32>
    %66 = arith.subf %64, %65 : vector<8x1xf32>
    %cst_31 = arith.constant 2.000000e+00 : f32
    %67 = vector.broadcast %cst_31 : f32 to vector<8x8xf32>
    %68 = arith.subf %35, %67 : vector<8x8xf32>
    %cst_32 = arith.constant 0.000000e+00 : f32
    %cst_33 = arith.constant 1.000000e+00 : f32
    %69 = vector.broadcast %cst_32 : f32 to vector<8x8xf32>
    %70 = arith.maximumf %69, %68 : vector<8x8xf32>
    %71 = vector.broadcast %cst_33 : f32 to vector<8x8xf32>
    %72 = arith.minimumf %71, %70 : vector<8x8xf32>
    %73 = vector.broadcast %66 : vector<8x1xf32> to vector<8x8xf32>
    %74 = arith.mulf %73, %72 : vector<8x8xf32>
    %75 = arith.addf %63, %74 : vector<8x8xf32>
    %76 = vector.extract_strided_slice %37 {offsets = [0, 4], sizes = [8, 1], strides = [1, 1]} : vector<8x128xf32> to vector<8x1xf32>
    %77 = vector.extract_strided_slice %37 {offsets = [0, 3], sizes = [8, 1], strides = [1, 1]} : vector<8x128xf32> to vector<8x1xf32>
    %78 = arith.subf %76, %77 : vector<8x1xf32>
    %cst_34 = arith.constant 3.000000e+00 : f32
    %79 = vector.broadcast %cst_34 : f32 to vector<8x8xf32>
    %80 = arith.subf %35, %79 : vector<8x8xf32>
    %cst_35 = arith.constant 0.000000e+00 : f32
    %cst_36 = arith.constant 1.000000e+00 : f32
    %81 = vector.broadcast %cst_35 : f32 to vector<8x8xf32>
    %82 = arith.maximumf %81, %80 : vector<8x8xf32>
    %83 = vector.broadcast %cst_36 : f32 to vector<8x8xf32>
    %84 = arith.minimumf %83, %82 : vector<8x8xf32>
    %85 = vector.broadcast %78 : vector<8x1xf32> to vector<8x8xf32>
    %86 = arith.mulf %85, %84 : vector<8x8xf32>
    %87 = arith.addf %75, %86 : vector<8x8xf32>
    %88 = vector.extract_strided_slice %37 {offsets = [0, 5], sizes = [8, 1], strides = [1, 1]} : vector<8x128xf32> to vector<8x1xf32>
    %89 = vector.extract_strided_slice %37 {offsets = [0, 4], sizes = [8, 1], strides = [1, 1]} : vector<8x128xf32> to vector<8x1xf32>
    %90 = arith.subf %88, %89 : vector<8x1xf32>
    %cst_37 = arith.constant 4.000000e+00 : f32
    %91 = vector.broadcast %cst_37 : f32 to vector<8x8xf32>
    %92 = arith.subf %35, %91 : vector<8x8xf32>
    %cst_38 = arith.constant 0.000000e+00 : f32
    %cst_39 = arith.constant 1.000000e+00 : f32
    %93 = vector.broadcast %cst_38 : f32 to vector<8x8xf32>
    %94 = arith.maximumf %93, %92 : vector<8x8xf32>
    %95 = vector.broadcast %cst_39 : f32 to vector<8x8xf32>
    %96 = arith.minimumf %95, %94 : vector<8x8xf32>
    %97 = vector.broadcast %90 : vector<8x1xf32> to vector<8x8xf32>
    %98 = arith.mulf %97, %96 : vector<8x8xf32>
    %99 = arith.addf %87, %98 : vector<8x8xf32>
    %100 = vector.extract_strided_slice %37 {offsets = [0, 6], sizes = [8, 1], strides = [1, 1]} : vector<8x128xf32> to vector<8x1xf32>
    %101 = vector.extract_strided_slice %37 {offsets = [0, 5], sizes = [8, 1], strides = [1, 1]} : vector<8x128xf32> to vector<8x1xf32>
    %102 = arith.subf %100, %101 : vector<8x1xf32>
    %cst_40 = arith.constant 5.000000e+00 : f32
    %103 = vector.broadcast %cst_40 : f32 to vector<8x8xf32>
    %104 = arith.subf %35, %103 : vector<8x8xf32>
    %cst_41 = arith.constant 0.000000e+00 : f32
    %cst_42 = arith.constant 1.000000e+00 : f32
    %105 = vector.broadcast %cst_41 : f32 to vector<8x8xf32>
    %106 = arith.maximumf %105, %104 : vector<8x8xf32>
    %107 = vector.broadcast %cst_42 : f32 to vector<8x8xf32>
    %108 = arith.minimumf %107, %106 : vector<8x8xf32>
    %109 = vector.broadcast %102 : vector<8x1xf32> to vector<8x8xf32>
    %110 = arith.mulf %109, %108 : vector<8x8xf32>
    %111 = arith.addf %99, %110 : vector<8x8xf32>
    %112 = vector.extract_strided_slice %37 {offsets = [0, 7], sizes = [8, 1], strides = [1, 1]} : vector<8x128xf32> to vector<8x1xf32>
    %113 = vector.extract_strided_slice %37 {offsets = [0, 6], sizes = [8, 1], strides = [1, 1]} : vector<8x128xf32> to vector<8x1xf32>
    %114 = arith.subf %112, %113 : vector<8x1xf32>
    %cst_43 = arith.constant 6.000000e+00 : f32
    %115 = vector.broadcast %cst_43 : f32 to vector<8x8xf32>
    %116 = arith.subf %35, %115 : vector<8x8xf32>
    %cst_44 = arith.constant 0.000000e+00 : f32
    %cst_45 = arith.constant 1.000000e+00 : f32
    %117 = vector.broadcast %cst_44 : f32 to vector<8x8xf32>
    %118 = arith.maximumf %117, %116 : vector<8x8xf32>
    %119 = vector.broadcast %cst_45 : f32 to vector<8x8xf32>
    %120 = arith.minimumf %119, %118 : vector<8x8xf32>
    %121 = vector.broadcast %114 : vector<8x1xf32> to vector<8x8xf32>
    %122 = arith.mulf %121, %120 : vector<8x8xf32>
    %123 = arith.addf %111, %122 : vector<8x8xf32>
    %124 = arith.addf %16, %123 : vector<8x8xf32>
    %cst_46 = arith.constant dense<0xFF800000> : vector<8xf32>
    %125 = vector.multi_reduction <maximumf>, %124, %cst_46 [1] : vector<8x8xf32> to vector<8xf32>
    %126 = vector.shape_cast %125 : vector<8xf32> to vector<8x1xf32>
    %127 = vector.broadcast %126 : vector<8x1xf32> to vector<8x8xf32>
    %128 = arith.subf %124, %127 : vector<8x8xf32>
    %129 = math.exp %128 : vector<8x8xf32>
    %cst_47 = arith.constant dense<0.000000e+00> : vector<8xf32>
    %130 = vector.multi_reduction <add>, %129, %cst_47 [1] : vector<8x8xf32> to vector<8xf32>
    %131 = vector.shape_cast %130 : vector<8xf32> to vector<8x1xf32>
    %132 = tpu.reciprocal %131 {approx = true} : vector<8x1xf32> -> vector<8x1xf32>
    %133 = vector.broadcast %132 : vector<8x1xf32> to vector<8x8xf32>
    %134 = arith.mulf %129, %133 : vector<8x8xf32>
    %135 = arith.truncf %134 : vector<8x8xf32> to vector<8x8xbf16>
    %cst_48 = arith.constant dense<0.000000e+00> : vector<8x8xf32>
    %136 = tpu.matmul %135, %5, %cst_48 {dimension_numbers = #tpu.dot_dimension_numbers<[1], [0], [0], [1], [0, 0, 1, 1], [], []>} : vector<8x8xbf16>, vector<8x8xbf16>, vector<8x8xf32> -> vector<8x8xf32>
    %137 = arith.truncf %136 : vector<8x8xf32> to vector<8x8xbf16>
    %c0_49 = arith.constant 0 : index
    %c0_50 = arith.constant 0 : index
    %c0_51 = arith.constant 0 : index
    %c0_52 = arith.constant 0 : index
    %138 = vector.load %arg8[%c0_49, %c0_50, %c0_51, %c0_52] : memref<1x1x8x8xbf16, #tpu.memory_space<vmem>>, vector<1x1x8x8xbf16>
    %139 = vector.shape_cast %138 : vector<1x1x8x8xbf16> to vector<8x8xbf16>
    %140 = vector.shape_cast %137 : vector<8x8xbf16> to vector<1x1x8x8xbf16>
    tpu.vector_store %arg8[%c0_49, %c0_50, %c0_51, %c0_52], %140 {strides = array<i32>} : memref<1x1x8x8xbf16, #tpu.memory_space<vmem>>, vector<1x1x8x8xbf16>,
    return
  }
  func.func @transform_0(%arg0: i32, %arg1: i32, %arg2: i32) -> (i32, i32, i32, i32) {
    %c0_i32 = arith.constant 0 : i32
    %c0_i32_0 = arith.constant 0 : i32
    return %arg0, %arg1, %arg2, %c0_i32 : i32, i32, i32, i32
  }
  func.func @transform_1(%arg0: i32, %arg1: i32, %arg2: i32) -> (i32, i32, i32, i32) {
    %c0_i32 = arith.constant 0 : i32
    %c0_i32_0 = arith.constant 0 : i32
    %c0_i32_1 = arith.constant 0 : i32
    return %arg0, %arg1, %c0_i32, %c0_i32_0 : i32, i32, i32, i32
  }
  func.func @transform_2(%arg0: i32, %arg1: i32, %arg2: i32) -> (i32, i32, i32, i32) {
    %c0_i32 = arith.constant 0 : i32
    %c0_i32_0 = arith.constant 0 : i32
    %c0_i32_1 = arith.constant 0 : i32
    return %arg0, %arg1, %c0_i32, %c0_i32_0 : i32, i32, i32, i32
  }
  func.func @transform_3(%arg0: i32, %arg1: i32, %arg2: i32) -> (i32, i32, i32) {
    %c0_i32 = arith.constant 0 : i32
    %c0_i32_0 = arith.constant 0 : i32
    return %arg0, %arg2, %c0_i32 : i32, i32, i32
  }
  func.func @transform_4(%arg0: i32, %arg1: i32, %arg2: i32) -> (i32, i32) {
    %c0_i32 = arith.constant 0 : i32
    %c0_i32_0 = arith.constant 0 : i32
    %c0_i32_1 = arith.constant 0 : i32
    return %c0_i32, %c0_i32_0 : i32, i32
  }
  func.func @transform_5(%arg0: i32, %arg1: i32, %arg2: i32) -> (i32, i32, i32, i32) {
    %c0_i32 = arith.constant 0 : i32
    %c0_i32_0 = arith.constant 0 : i32
    return %arg0, %arg1, %arg2, %c0_i32 : i32, i32, i32, i32
  }
}

</mosaic_0001>

<llo_original>
// kernel: tpu_custom_call.1
$region0: #{tpu_custom_call.1}
  #allocation0 [shape = 'u32[]', space=smem, size = 0x4, offset = 0x4, fixed_abs, tag = 'smem constant byte address 0x4 - core index']
  #allocation1 [shape = 'u32[144,128]{1,0:T(1,128)}', space=vmem, size = 0x12000, scoped, tag = 'internal scratch']
  %s0 = inlined_call_operand.hbm [shape: bf16[2,4,8,8], index: 0, kind: input, shape index: {}]
  %s1 = inlined_call_operand.hbm [shape: bf16[2,4,8,8], index: 1, kind: input, shape index: {}]
  %s2 = inlined_call_operand.hbm [shape: bf16[2,4,8,8], index: 2, kind: input, shape index: {}]
  %s3 = inlined_call_operand.vmem [shape: s8[2,8,8], index: 3, kind: input, shape index: {}]
  %s4 = inlined_call_operand.hbm [shape: bf16[8,128], index: 4, kind: input, shape index: {}]
  %s5 = inlined_call_operand.hbm [shape: bf16[2,4,8,8], index: 5, kind: output, shape index: {}]
  %s6 = sld [smem:[#allocation0]]
  $region69: #{tpu_custom_call.1} parent=0
    _
  %s8 = ssub.s32 1, %s6
  %s9 = scalar_select 0, %s8, %s6
  $region1: #{tpu_custom_call.1} parent=0
    #allocation2 [shape = 'u8[4096]{0}', space=vmem, size = 0x1000, scoped, tag = 'input window, operand 0']
    #allocation3 [shape = 's32[2]{0}', space=sflag, size = 0x8, scoped, tag = 'scoped memory for tpu_custom_call.1']
    #allocation4 [shape = 's32[2]{0}', space=sflag, size = 0x8, scoped, tag = 'scoped memory for tpu_custom_call.1']
    #allocation5 [shape = 'u8[4096]{0}', space=vmem, size = 0x1000, scoped, tag = 'input window, operand 1']
    #allocation6 [shape = 's32[2]{0}', space=sflag, size = 0x8, scoped, tag = 'scoped memory for tpu_custom_call.1']
    #allocation7 [shape = 'u8[4096]{0}', space=vmem, size = 0x1000, scoped, tag = 'input window, operand 2']
    #allocation8 [shape = 'u8[2048]{0}', space=vmem, size = 0x800, scoped, tag = 'input window, operand 4, single buffered']
    #allocation9 [shape = 's32[1]{0}', space=sflag, size = 0x4, scoped, tag = 'scoped memory for tpu_custom_call.1']
    #allocation10 [shape = 'u8[4096]{0}', space=vmem, size = 0x1000, scoped, tag = 'output window, operand 0']
    %10 = vsyncpa [#allocation3], 0
    %s11 = scalar_lea.sflag [#allocation3], 1
    %12 = vsyncpa %s11, 0
    %13 = vsyncpa [#allocation6], 0
    %s14 = scalar_lea.sflag [#allocation6], 1
    %15 = vsyncpa %s14, 0
    %16 = vsyncpa [#allocation9], 0
    %17 = vsyncpa [#allocation4], 0
    %s18 = scalar_lea.sflag [#allocation4], 1
    %19 = vsyncpa %s18, 0
    loop: start=0, step=1, limit=10
    $region2: #{tpu_custom_call.1} parent=1 // loop_pre_header
      _
    $region3: #{tpu_custom_call.1} parent=1 // loop_header
      %s21 = sphi 0, %s25
      %p22 = scmp.ge.s32.totalorder %s21, 10
      %s28 = sphi 0, %s47
      %s29 = sphi 0, %s43
      %s30 = sphi 0, %s39
      %s31 = sphi 0, %s28
      %s32 = sphi 0, %s29
      %s33 = sphi 0, %s30
      %s34 = sphi 0, %s31
      %s35 = sphi 0, %s32
      %s36 = sphi 0, %s33
      %s54 = sphi 0, %s56
      %s57 = sphi 0, %s54
      %s58 = sphi 0, %s57
      %s74 = sphi 0, %s58
      %s82 = sphi 0, %s84
      %s85 = sphi 0, %s82
      %s86 = sphi 0, %s85
      %s102 = sphi 0, %s86
      %s110 = sphi 0, %s112
      %s113 = sphi 0, %s110
      %s114 = sphi 0, %s113
      %s130 = sphi 0, %s114
      %s138 = sphi 0, %s140
      %s141 = sphi 0, %s138
      %s142 = sphi 0, %s141
      %s158 = sphi 0, %s142
      %s162 = sphi 0, %s162
      %s164 = sphi 0, %s162
      %s165 = sphi 0, %s164
      %s179 = sphi 0, %s165
      %s189 = sphi 0, %s191
      %s192 = sphi 0, %s189
      %s193 = sphi 0, %s192
      %s209 = sphi 0, %s193
    $region4: #{tpu_custom_call.1} parent=1 // loop_header_branch
      %24 = sbr.rel (%p22) target = $region8
    $region5: #{tpu_custom_call.1} parent=1 // loop_body
      %s26 = ssub.s32 %s21, 1
      %s27 = ssub.s32 %s21, 2
      %s37 = sadd.s32 1, %s30
      %p38 = scmp.ge.s32.totalorder %s37, 1
      %s39 = scalar_select %p38, 0, %s37
      %s40 = sadd.s32 1, %s29
      %s41 = scalar_select %p38, %s40, %s29
      %p42 = scmp.ge.s32.totalorder %s41, 4
      %s43 = scalar_select %p42, 0, %s41
      %s44 = sadd.s32 1, %s28
      %s45 = scalar_select %p42, %s44, %s28
      %p46 = scmp.ge.s32.totalorder %s45, 2
      %s47 = scalar_select %p46, 0, %s45
      %s48 = ssub.s32 %s28, %s47
      %s49 = ssub.s32 %s29, %s43
      %s50 = sor.u32 %s48, %s49
      %s51 = ssub.s32 %s30, %s39
      %s52 = sor.u32 %s50, %s51
      %p53 = scmp.eq.s32.totalorder %s52, 0
      %s55 = sadd.s32 %s54, 1
      %s56 = scalar_select %p53, %s54, %s55
      %p59 = pneg %p53
      %p60 = scmp.eq.s32.totalorder %s21, 7
      %p61 = por %p59, %p60
      %p62 = scmp.ne.s32.totalorder %s54, %s57
      %p63 = scmp.eq.s32.totalorder %s21, 0
      %p64 = por %p62, %p63
      %p65 = scmp.ne.s32.totalorder %s54, %s57
      %p66 = scmp.eq.s32.totalorder %s26, 7
      %p67 = por %p65, %p66
      %p68 = scmp.ne.s32.totalorder %s57, %s58
      %p69 = scmp.eq.s32.totalorder %s26, 0
      %p70 = por %p68, %p69
      %p71 = scmp.ne.s32.totalorder %s57, %s58
      %p72 = scmp.eq.s32.totalorder %s27, 7
      %p73 = por %p71, %p72
      %p75 = scmp.ne.s32.totalorder %s58, %s74
      %p76 = scmp.eq.s32.totalorder %s27, 0
      %p77 = por %p75, %p76
      %s78 = ssub.s32 %s28, %s47
      %s79 = ssub.s32 %s29, %s43
      %s80 = sor.u32 %s78, %s79
      %p81 = scmp.eq.s32.totalorder %s80, 0
      %s83 = sadd.s32 %s82, 1
      %s84 = scalar_select %p81, %s82, %s83
      %p87 = pneg %p81
      %p88 = scmp.eq.s32.totalorder %s21, 7
      %p89 = por %p87, %p88
      %p90 = scmp.ne.s32.totalorder %s82, %s85
      %p91 = scmp.eq.s32.totalorder %s21, 0
      %p92 = por %p90, %p91
      %p93 = scmp.ne.s32.totalorder %s82, %s85
      %p94 = scmp.eq.s32.totalorder %s26, 7
      %p95 = por %p93, %p94
      %p96 = scmp.ne.s32.totalorder %s85, %s86
      %p97 = scmp.eq.s32.totalorder %s26, 0
      %p98 = por %p96, %p97
      %p99 = scmp.ne.s32.totalorder %s85, %s86
      %p100 = scmp.eq.s32.totalorder %s27, 7
      %p101 = por %p99, %p100
      %p103 = scmp.ne.s32.totalorder %s86, %s102
      %p104 = scmp.eq.s32.totalorder %s27, 0
      %p105 = por %p103, %p104
      %s106 = ssub.s32 %s28, %s47
      %s107 = ssub.s32 %s29, %s43
      %s108 = sor.u32 %s106, %s107
      %p109 = scmp.eq.s32.totalorder %s108, 0
      %s111 = sadd.s32 %s110, 1
      %s112 = scalar_select %p109, %s110, %s111
      %p115 = pneg %p109
      %p116 = scmp.eq.s32.totalorder %s21, 7
      %p117 = por %p115, %p116
      %p118 = scmp.ne.s32.totalorder %s110, %s113
      %p119 = scmp.eq.s32.totalorder %s21, 0
      %p120 = por %p118, %p119
      %p121 = scmp.ne.s32.totalorder %s110, %s113
      %p122 = scmp.eq.s32.totalorder %s26, 7
      %p123 = por %p121, %p122
      %p124 = scmp.ne.s32.totalorder %s113, %s114
      %p125 = scmp.eq.s32.totalorder %s26, 0
      %p126 = por %p124, %p125
      %p127 = scmp.ne.s32.totalorder %s113, %s114
      %p128 = scmp.eq.s32.totalorder %s27, 7
      %p129 = por %p127, %p128
      %p131 = scmp.ne.s32.totalorder %s114, %s130
      %p132 = scmp.eq.s32.totalorder %s27, 0
      %p133 = por %p131, %p132
      %s134 = ssub.s32 %s28, %s47
      %s135 = ssub.s32 %s30, %s39
      %s136 = sor.u32 %s134, %s135
      %p137 = scmp.eq.s32.totalorder %s136, 0
      %s139 = sadd.s32 %s138, 1
      %s140 = scalar_select %p137, %s138, %s139
      %p143 = pneg %p137
      %p144 = scmp.eq.s32.totalorder %s21, 7
      %p145 = por %p143, %p144
      %p146 = scmp.ne.s32.totalorder %s138, %s141
      %p147 = scmp.eq.s32.totalorder %s21, 0
      %p148 = por %p146, %p147
      %p149 = scmp.ne.s32.totalorder %s138, %s141
      %p150 = scmp.eq.s32.totalorder %s26, 7
      %p151 = por %p149, %p150
      %p152 = scmp.ne.s32.totalorder %s141, %s142
      %p153 = scmp.eq.s32.totalorder %s26, 0
      %p154 = por %p152, %p153
      %p155 = scmp.ne.s32.totalorder %s141, %s142
      %p156 = scmp.eq.s32.totalorder %s27, 7
      %p157 = por %p155, %p156
      %p159 = scmp.ne.s32.totalorder %s142, %s158
      %p160 = scmp.eq.s32.totalorder %s27, 0
      %p161 = por %p159, %p160
      %s163 = sadd.s32 %s162, 1
      %p166 = scmp.eq.s32.totalorder %s21, 7
      %p167 = scmp.ne.s32.totalorder %s162, %s164
      %p168 = scmp.eq.s32.totalorder %s21, 0
      %p169 = por %p167, %p168
      %p170 = scmp.ne.s32.totalorder %s162, %s164
      %p171 = scmp.eq.s32.totalorder %s26, 7
      %p172 = por %p170, %p171
      %p173 = scmp.ne.s32.totalorder %s164, %s165
      %p174 = scmp.eq.s32.totalorder %s26, 0
      %p175 = por %p173, %p174
      %p176 = scmp.ne.s32.totalorder %s164, %s165
      %p177 = scmp.eq.s32.totalorder %s27, 7
      %p178 = por %p176, %p177
      %p180 = scmp.ne.s32.totalorder %s165, %s179
      %p181 = scmp.eq.s32.totalorder %s27, 0
      %p182 = por %p180, %p181
      %s183 = ssub.s32 %s28, %s47
      %s184 = ssub.s32 %s29, %s43
      %s185 = sor.u32 %s183, %s184
      %s186 = ssub.s32 %s30, %s39
      %s187 = sor.u32 %s185, %s186
      %p188 = scmp.eq.s32.totalorder %s187, 0
      %s190 = sadd.s32 %s189, 1
      %s191 = scalar_select %p188, %s189, %s190
      %p194 = pneg %p188
      %p195 = scmp.eq.s32.totalorder %s21, 7
      %p196 = por %p194, %p195
      %p197 = scmp.ne.s32.totalorder %s189, %s192
      %p198 = scmp.eq.s32.totalorder %s21, 0
      %p199 = por %p197, %p198
      %p200 = scmp.ne.s32.totalorder %s189, %s192
      %p201 = scmp.eq.s32.totalorder %s26, 7
      %p202 = por %p200, %p201
      %p203 = scmp.ne.s32.totalorder %s192, %s193
      %p204 = scmp.eq.s32.totalorder %s26, 0
      %p205 = por %p203, %p204
      %p206 = scmp.ne.s32.totalorder %s192, %s193
      %p207 = scmp.eq.s32.totalorder %s27, 7
      %p208 = por %p206, %p207
      %p210 = scmp.ne.s32.totalorder %s193, %s209
      %p211 = scmp.eq.s32.totalorder %s27, 0
      %p212 = por %p210, %p211
      %p213 = scmp.le.s32.totalorder 1, %s21
      %p214 = scmp.lt.s32.totalorder %s21, 9
      %p215 = pnand %p213, %p214
      %p216 = pneg %p215
      // Predicated region
      $region9: #{tpu_custom_call.1} parent=5 // pred_check
        _
      $region10: #{tpu_custom_call.1} parent=5 // pred_check_branch
        %218 = sbr.rel (%p215) target = $region12
      $region11: #{tpu_custom_call.1} parent=5 // pred_region
        %s219 = ssub.s32 %s21, 1
        // Predicated region
        $region13: #{tpu_custom_call.1} parent=11 // pred_check
          %p220 = pneg %p175
        $region14: #{tpu_custom_call.1} parent=11 // pred_check_branch
          %222 = sbr.rel (%p220) target = $region16
        $region15: #{tpu_custom_call.1} parent=11 // pred_region
          %s224 = ssub.s32 64, 64
          %225 = vsyncadd [#allocation9], %s224
          %s227 = sshll.u32 [#allocation8], 4
          %s228 = int_to_ptr.vmem [resolvable:$true] %s227
          %230 = dma.hbm_to_vmem [thread:$0]  %s4, 64, %s228, [#allocation9]
        $region16: #{tpu_custom_call.1} parent=11 // pred_fallthru
          _
      $region12: #{tpu_custom_call.1} parent=5 // pred_fallthru
        _
      %p231 = scmp.lt.s32.totalorder %s21, 8
      // Predicated region
      $region17: #{tpu_custom_call.1} parent=5 // pred_check
        %p232 = pneg %p231
      $region18: #{tpu_custom_call.1} parent=5 // pred_check_branch
        %234 = sbr.rel (%p232) target = $region20
      $region19: #{tpu_custom_call.1} parent=5 // pred_region
        // Predicated region
        $region21: #{tpu_custom_call.1} parent=19 // pred_check
          %p235 = pneg %p64
        $region22: #{tpu_custom_call.1} parent=19 // pred_check_branch
          %237 = sbr.rel (%p235) target = $region24
        $region23: #{tpu_custom_call.1} parent=19 // pred_region
          %s238 = sand.u32 %s54, 1
          %s239 = scalar_lea.sflag [#allocation3], %s238
          %s240 = sand.u32 %s54, 1
          %s241 = smul.addr %s240, 4
          %s242 = scalar_lea.vmem [#allocation2], %s241
          %s244 = ssub.s32 64, 64
          %245 = vsyncadd %s239, %s244
          %s246 = sadd.s32 %s30, %s29
          %s247 = smul.addr %s28, 4
          %s248 = sadd.s32 %s246, %s247
          %s249 = smul.addr %s248, 64
          %s250 = scalar_lea.hbm %s0, %s249
          %s252 = sshll.u32 %s242, 4
          %s253 = int_to_ptr.vmem [resolvable:$true] %s252
          %255 = dma.hbm_to_vmem [thread:$0]  %s250, 64, %s253, %s239
        $region24: #{tpu_custom_call.1} parent=19 // pred_fallthru
          _
        // Predicated region
        $region25: #{tpu_custom_call.1} parent=19 // pred_check
          %p256 = pneg %p92
        $region26: #{tpu_custom_call.1} parent=19 // pred_check_branch
          %258 = sbr.rel (%p256) target = $region28
        $region27: #{tpu_custom_call.1} parent=19 // pred_region
          %s259 = sand.u32 %s21, 1
          %s260 = scalar_lea.sflag [#allocation6], %s259
          %s261 = sand.u32 %s82, 1
          %s262 = smul.addr %s261, 4
          %s263 = scalar_lea.vmem [#allocation5], %s262
          %s265 = ssub.s32 64, 64
          %266 = vsyncadd %s260, %s265
          %s267 = smul.addr %s28, 4
          %s268 = sadd.s32 %s29, %s267
          %s269 = smul.addr %s268, 64
          %s270 = scalar_lea.hbm %s1, %s269
          %s272 = sshll.u32 %s263, 4
          %s273 = int_to_ptr.vmem [resolvable:$true] %s272
          %275 = dma.hbm_to_vmem [thread:$0]  %s270, 64, %s273, %s260
        $region28: #{tpu_custom_call.1} parent=19 // pred_fallthru
          _
        // Predicated region
        $region29: #{tpu_custom_call.1} parent=19 // pred_check
          %p276 = pneg %p120
        $region30: #{tpu_custom_call.1} parent=19 // pred_check_branch
          %278 = sbr.rel (%p276) target = $region32
        $region31: #{tpu_custom_call.1} parent=19 // pred_region
          %s279 = sand.u32 %s21, 1
          %s280 = scalar_lea.sflag [#allocation6], %s279
          %s281 = sand.u32 %s110, 1
          %s282 = smul.addr %s281, 4
          %s283 = scalar_lea.vmem [#allocation7], %s282
          %s285 = ssub.s32 64, 64
          %286 = vsyncadd %s280, %s285
          %s287 = smul.addr %s28, 4
          %s288 = sadd.s32 %s29, %s287
          %s289 = smul.addr %s288, 64
          %s290 = scalar_lea.hbm %s2, %s289
          %s292 = sshll.u32 %s283, 4
          %s293 = int_to_ptr.vmem [resolvable:$true] %s292
          %295 = dma.hbm_to_vmem [thread:$0]  %s290, 64, %s293, %s280
        $region32: #{tpu_custom_call.1} parent=19 // pred_fallthru
          _
        // Predicated region
        $region33: #{tpu_custom_call.1} parent=19 // pred_check
          %p296 = pneg %p148
        $region34: #{tpu_custom_call.1} parent=19 // pred_check_branch
          %298 = sbr.rel (%p296) target = $region36
        $region35: #{tpu_custom_call.1} parent=19 // pred_region
          %p299 = scmp.lt.s32.totalorder %s28, 1
          %s300 = scalar_select %p299, %s28, 1
          %p301 = scmp.lt.s32.totalorder %s30, 0
          %s302 = scalar_select %p301, %s30, 0
          %s303 = sadd.s32 %s302, %s300
          %s304 = smul.addr %s303, 2
          %s305 = scalar_lea.vmem %s3, %s304
        $region36: #{tpu_custom_call.1} parent=19 // pred_fallthru
          _
      $region20: #{tpu_custom_call.1} parent=5 // pred_fallthru
        _
      %p306 = scmp.le.s32.totalorder 1, %s21
      %p307 = scmp.lt.s32.totalorder %s21, 9
      %p308 = pnand %p306, %p307
      %p309 = pneg %p308
      // Predicated region
      $region37: #{tpu_custom_call.1} parent=5 // pred_check
        _
      $region38: #{tpu_custom_call.1} parent=5 // pred_check_branch
        %311 = sbr.rel (%p308) target = $region40
      $region39: #{tpu_custom_call.1} parent=5 // pred_region
        %s312 = ssub.s32 %s21, 1
        %s313 = sand.u32 %s57, 1
        %s314 = scalar_lea.sflag [#allocation3], %s313
        %s315 = sand.u32 %s57, 1
        %s316 = smul.addr %s315, 4
        %s317 = scalar_lea.vmem [#allocation2], %s316
        // Predicated region
        $region41: #{tpu_custom_call.1} parent=39 // pred_check
          %p318 = pneg %p70
        $region42: #{tpu_custom_call.1} parent=39 // pred_check_branch
          %320 = sbr.rel (%p318) target = $region44
        $region43: #{tpu_custom_call.1} parent=39 // pred_region
          %321 = dma.done %s314, 64
        $region44: #{tpu_custom_call.1} parent=39 // pred_fallthru
          _
        %s322 = sand.u32 %s26, 1
        %s323 = scalar_lea.sflag [#allocation6], %s322
        %s324 = sand.u32 %s85, 1
        %s325 = smul.addr %s324, 4
        %s326 = scalar_lea.vmem [#allocation5], %s325
        // Predicated region
        $region45: #{tpu_custom_call.1} parent=39 // pred_check
          %p327 = pneg %p98
        $region46: #{tpu_custom_call.1} parent=39 // pred_check_branch
          %329 = sbr.rel (%p327) target = $region48
        $region47: #{tpu_custom_call.1} parent=39 // pred_region
          %330 = dma.done %s323, 64
        $region48: #{tpu_custom_call.1} parent=39 // pred_fallthru
          _
        %s331 = sand.u32 %s26, 1
        %s332 = scalar_lea.sflag [#allocation6], %s331
        %s333 = sand.u32 %s113, 1
        %s334 = smul.addr %s333, 4
        %s335 = scalar_lea.vmem [#allocation7], %s334
        // Predicated region
        $region49: #{tpu_custom_call.1} parent=39 // pred_check
          %p336 = pneg %p126
        $region50: #{tpu_custom_call.1} parent=39 // pred_check_branch
          %338 = sbr.rel (%p336) target = $region52
        $region51: #{tpu_custom_call.1} parent=39 // pred_region
          %339 = dma.done %s332, 64
        $region52: #{tpu_custom_call.1} parent=39 // pred_fallthru
          _
        // Predicated region
        $region53: #{tpu_custom_call.1} parent=39 // pred_check
          %p340 = pneg %p175
        $region54: #{tpu_custom_call.1} parent=39 // pred_check_branch
          %342 = sbr.rel (%p340) target = $region56
        $region55: #{tpu_custom_call.1} parent=39 // pred_region
          %343 = dma.done [#allocation9], 64
        $region56: #{tpu_custom_call.1} parent=39 // pred_fallthru
          _
        %s344 = sand.u32 %s57, 1
        %s345 = scalar_lea.sflag [#allocation3], %s344
        %s346 = sand.u32 %s57, 1
        %s347 = smul.addr %s346, 4
        %s348 = scalar_lea.vmem [#allocation2], %s347
        %p349 = pneg %p70
        %p350 = pneg %p67
        %s351 = sand.u32 %s26, 1
        %s352 = scalar_lea.sflag [#allocation6], %s351
        %s353 = sand.u32 %s85, 1
        %s354 = smul.addr %s353, 4
        %s355 = scalar_lea.vmem [#allocation5], %s354
        %p356 = pneg %p98
        %p357 = pneg %p95
        %s358 = sand.u32 %s26, 1
        %s359 = scalar_lea.sflag [#allocation6], %s358
        %s360 = sand.u32 %s113, 1
        %s361 = smul.addr %s360, 4
        %s362 = scalar_lea.vmem [#allocation7], %s361
        %p363 = pneg %p126
        %p364 = pneg %p123
        %p365 = scmp.lt.s32.totalorder %s31, 1
        %s366 = scalar_select %p365, %s31, 1
        %p367 = scmp.lt.s32.totalorder %s33, 0
        %s368 = scalar_select %p367, %s33, 0
        %s369 = sadd.s32 %s368, %s366
        %s370 = smul.addr %s369, 2
        %s371 = scalar_lea.vmem %s3, %s370
        %p372 = pneg %p154
        %p373 = pneg %p151
        %p374 = pneg %p175
        %p375 = pneg %p172
        %p376 = pneg %p205
        %p377 = pneg %p202
        %s378 = sand.u32 %s192, 1
        %s379 = scalar_lea.sflag [#allocation4], %s378
        %s380 = sand.u32 %s192, 1
        %s381 = smul.addr %s380, 4
        %s382 = scalar_lea.vmem [#allocation10], %s381
        %p383 = scmp.lt.s32.totalorder %s31, 1
        %s384 = scalar_select %p383, %s31, 1
        %p385 = scmp.lt.s32.totalorder %s33, 0
        %s386 = scalar_select %p385, %s33, 0
        %s387 = sadd.s32 %s386, %s384
        %s388 = smul.addr %s387, 2
        %s389 = scalar_lea.vmem %s3, %s388
        %v391 = vld [vmem:[%s317] sm:$0xf]
        %v392 = vld [vmem:[%s326] sm:$0xf]
        %v393 = vld [vmem:[%s335] sm:$0xf]
        %vm394 = vcmask 64512
        %v396 = vsel %vm394, %v391, 0
        %v399 = vsel %vm394, %v392, 0
        %401 = vmatprep.subr.bf16.mxu0 0
        %402 = vmatpush1.bf16.xpose.msra.mxu0 0
        %403 = vmatprep.subr.bf16.mxu0 0
        %404 = vmatpush1.bf16.xpose.msra.mxu0 0
        %405 = vmatprep.subr.bf16.mxu0 0
        %406 = vmatpush1.bf16.xpose.msra.mxu0 0
        %407 = vmatprep.subr.bf16.mxu0 0
        %408 = vmatpush1.bf16.xpose.msra.mxu0 0
        %409 = vmatprep.subr.bf16.mxu0 0
        %410 = vmatpush1.bf16.xpose.msra.mxu0 0
        %411 = vmatprep.subr.bf16.mxu0 0
        %412 = vmatpush1.bf16.xpose.msra.mxu0 0
        %413 = vmatprep.subr.bf16.mxu0 0
        %414 = vmatpush1.bf16.xpose.msra.mxu0 0
        %415 = vmatprep.subr.bf16.mxu0 0
        %416 = vmatpush1.bf16.xpose.msra.mxu0 %v399
        %417 = vmatprep.subr.bf16.mxu0 0
        %418 = vmatpush2.bf16.xpose.msra.mxu0 0
        %419 = vmatprep.subr.bf16.mxu0 0
        %420 = vmatpush2.bf16.xpose.msra.mxu0 0
        %421 = vmatprep.subr.bf16.mxu0 0
        %422 = vmatpush2.bf16.xpose.msra.mxu0 0
        %423 = vmatprep.subr.bf16.mxu0 0
        %424 = vmatpush2.bf16.xpose.msra.mxu0 0
        %425 = vmatprep.subr.bf16.mxu0 0
        %426 = vmatpush2.bf16.xpose.msra.mxu0 0
        %427 = vmatprep.subr.bf16.mxu0 0
        %428 = vmatpush2.bf16.xpose.msra.mxu0 0
        %429 = vmatprep.subr.bf16.mxu0 0
        %430 = vmatpush2.bf16.xpose.msra.mxu0 0
        %431 = vmatprep.subr.bf16.mxu0 0
        %432 = vmatpush2.bf16.xpose.msra.mxu0 0
        %433 = vmatprep.mubr.bf16.mxu0 0
        %434 = vmatmul.mubr.bf16.gmra.mxu0 %v396
        %v435 = vpop.f32.mrf.mxu0
        %v436 = vadd.f32 0.0, %v435
        %v437 = vpop.f32.mrf.mxu0
        %v438 = vpop.f32.mrf.mxu0
        %v439 = vpop.f32.mrf.mxu0
        %440 = vdwg.mxu0
        %v441 = vmul.f32 %v436, 0.35355338
        %v442 = vld [vmem:[%s389] sm:$0x3]
        %v443 = vunpack.c.0.s8 %v442
        %v444 = vcvt.s32.f32 %v443
        %v445 = vsub.f32 %v444, 1.0
        %v446 = vmul.f32 %v445, 1e+30
        %v447 = vadd.f32 %v441, %v446
        %v448 = vxor.u32 %v447, 2147483648
        %v449 = vmul.f32 %v448, 1.442695
        %v450 = vpow.pop %v449
        %v451 = vadd.f32 %v450, 1.0
        %v452 = vrcp.pop %v451
        %v453 = vmul.f32 1.0, %v452
        %455 = vrot.lane.b32.xlu0 %v453, 127
        %v456 = vpop.permute.xlu0 %455
        %vm458 = vcmask 56320
        %v459 = vsel %vm458, %v456, 0.0
        %v460 = vadd.f32 %v453, %v459
        %462 = vrot.lane.b32.xlu0 %v460, 126
        %v463 = vpop.permute.xlu0 %462
        %vm465 = vcmask 48128
        %v466 = vsel %vm465, %v463, 0.0
        %v467 = vadd.f32 %v460, %v466
        %469 = vrot.lane.b32.xlu0 %v467, 124
        %v470 = vpop.permute.xlu0 %469
        %vm472 = vcmask 31744
        %v473 = vsel %vm472, %v470, 0.0
        %v474 = vadd.f32 %v467, %v473
        %v475 = vmin.f32 %v474, 7.0
        %v476 = vld [vmem:[#allocation8] sm:$0xf]
        %vm477 = vcmask 1043456
        %v479 = vsel %vm477, %v476, 0
        %481 = vmatprep.subr.bf16.mxu0 0
        %482 = vmatpush1.bf16.msra.mxu0 0
        %483 = vmatprep.subr.bf16.mxu0 0
        %484 = vmatpush1.bf16.msra.mxu0 0
        %485 = vmatprep.subr.bf16.mxu0 0
        %486 = vmatpush1.bf16.msra.mxu0 0
        %487 = vmatprep.subr.bf16.mxu0 0
        %488 = vmatpush1.bf16.msra.mxu0 0
        %489 = vmatprep.subr.bf16.mxu0 0
        %490 = vmatpush1.bf16.msra.mxu0 0
        %491 = vmatprep.subr.bf16.mxu0 0
        %492 = vmatpush1.bf16.msra.mxu0 0
        %493 = vmatprep.subr.bf16.mxu0 0
        %494 = vmatpush1.bf16.msra.mxu0 0
        %495 = vmatprep.subr.bf16.mxu0 0
        %496 = vmatpush1.bf16.msra.mxu0 %v479
        %497 = vmatprep.subr.bf16.mxu0 0
        %498 = vmatpush2.bf16.msra.mxu0 0
        %499 = vmatprep.subr.bf16.mxu0 0
        %500 = vmatpush2.bf16.msra.mxu0 0
        %501 = vmatprep.subr.bf16.mxu0 0
        %502 = vmatpush2.bf16.msra.mxu0 0
        %503 = vmatprep.subr.bf16.mxu0 0
        %504 = vmatpush2.bf16.msra.mxu0 0
        %505 = vmatprep.subr.bf16.mxu0 0
        %506 = vmatpush2.bf16.msra.mxu0 0
        %507 = vmatprep.subr.bf16.mxu0 0
        %508 = vmatpush2.bf16.msra.mxu0 0
        %509 = vmatprep.subr.bf16.mxu0 0
        %510 = vmatpush2.bf16.msra.mxu0 0
        %511 = vmatprep.subr.bf16.mxu0 0
        %512 = vmatpush2.bf16.msra.mxu0 0
        %513 = vmatprep.mubr.bf16.mxu0 0
        %514 = vmatmul.mubr.bf16.gmra.mxu0 %v396
        %v515 = vpop.f32.mrf.mxu0
        %v516 = vadd.f32 0.0, %v515
        %v517 = vpop.f32.mrf.mxu0
        %v518 = vpop.f32.mrf.mxu0
        %v519 = vpop.f32.mrf.mxu0
        %520 = vdwg.mxu0
        %522 = vrot.lane.b32.xlu0 %v516, 1
        %v523 = vpop.permute.xlu0 %522
        %v525 = vsub.f32 %v516, %v523
        %v526 = vmax.f32 %v475, 0.0
        %v527 = vmin.f32 %v526, 1.0
        %529 = vset.pattern.permute.xlu0 1
        %530 = vperm.xlu0 %529, %v525
        %v531 = vpop.permute.xlu0 %530
        %v533 = vmul.f32 %v531, %v527
        %534 = vset.pattern.permute.xlu0 0
        %535 = vperm.xlu0 %534, %v516
        %v536 = vpop.permute.xlu0 %535
        %v538 = vadd.f32 %v536, %v533
        %v539 = vsub.f32 %v475, 1.0
        %v540 = vmax.f32 %v539, 0.0
        %v541 = vmin.f32 %v540, 1.0
        %542 = vset.pattern.permute.xlu0 2
        %543 = vperm.xlu0 %542, %v525
        %v544 = vpop.permute.xlu0 %543
        %v546 = vmul.f32 %v544, %v541
        %v547 = vadd.f32 %v538, %v546
        %v548 = vsub.f32 %v475, 2.0
        %v549 = vmax.f32 %v548, 0.0
        %v550 = vmin.f32 %v549, 1.0
        %551 = vset.pattern.permute.xlu0 3
        %552 = vperm.xlu0 %551, %v525
        %v553 = vpop.permute.xlu0 %552
        %v555 = vmul.f32 %v553, %v550
        %v556 = vadd.f32 %v547, %v555
        %v557 = vsub.f32 %v475, 3.0
        %v558 = vmax.f32 %v557, 0.0
        %v559 = vmin.f32 %v558, 1.0
        %560 = vset.pattern.permute.xlu0 4
        %561 = vperm.xlu0 %560, %v525
        %v562 = vpop.permute.xlu0 %561
        %v564 = vmul.f32 %v562, %v559
        %v565 = vadd.f32 %v556, %v564
        %v566 = vsub.f32 %v475, 4.0
        %v567 = vmax.f32 %v566, 0.0
        %v568 = vmin.f32 %v567, 1.0
        %569 = vset.pattern.permute.xlu0 5
        %570 = vperm.xlu0 %569, %v525
        %v571 = vpop.permute.xlu0 %570
        %v573 = vmul.f32 %v571, %v568
        %v574 = vadd.f32 %v565, %v573
        %v575 = vsub.f32 %v475, 5.0
        %v576 = vmax.f32 %v575, 0.0
        %v577 = vmin.f32 %v576, 1.0
        %578 = vset.pattern.permute.xlu0 6
        %579 = vperm.xlu0 %578, %v525
        %v580 = vpop.permute.xlu0 %579
        %v582 = vmul.f32 %v580, %v577
        %v583 = vadd.f32 %v574, %v582
        %v584 = vsub.f32 %v475, 6.0
        %v585 = vmax.f32 %v584, 0.0
        %v586 = vmin.f32 %v585, 1.0
        %587 = vset.pattern.permute.xlu0 7
        %588 = vperm.xlu0 %587, %v525
        %v589 = vpop.permute.xlu0 %588
        %v591 = vmul.f32 %v589, %v586
        %v592 = vadd.f32 %v583, %v591
        %v593 = vadd.f32 %v447, %v592
        %v594 = vsel %vm394, %v593, -inf
        %595 = vmax.xlane.f32.xlu0 %v594
        %v596 = vpop.xlane.xlu0 %595
        %v597 = vsub.f32 %v593, %v596
        %v598 = vmul.f32 %v597, 1.442695
        %v599 = vpow.pop %v598
        %v600 = vsel %vm394, %v599, 0.0
        %601 = vadd.xlane.f32.xlu0 %v600
        %v602 = vpop.xlane.xlu0 %601
        %v603 = vrcp.pop %v602
        %v604 = vmul.f32 %v599, %v603
        %v605 = vpack.c.bf16 %v604, %v604
        %v607 = vsel %vm394, %v605, 0
        %v610 = vsel %vm477, %v393, 0
        %612 = vmatprep.subr.bf16.mxu0 0
        %613 = vmatpush1.bf16.msra.mxu0 0
        %614 = vmatprep.subr.bf16.mxu0 0
        %615 = vmatpush1.bf16.msra.mxu0 0
        %616 = vmatprep.subr.bf16.mxu0 0
        %617 = vmatpush1.bf16.msra.mxu0 0
        %618 = vmatprep.subr.bf16.mxu0 0
        %619 = vmatpush1.bf16.msra.mxu0 0
        %620 = vmatprep.subr.bf16.mxu0 0
        %621 = vmatpush1.bf16.msra.mxu0 0
        %622 = vmatprep.subr.bf16.mxu0 0
        %623 = vmatpush1.bf16.msra.mxu0 0
        %624 = vmatprep.subr.bf16.mxu0 0
        %625 = vmatpush1.bf16.msra.mxu0 0
        %626 = vmatprep.subr.bf16.mxu0 0
        %627 = vmatpush1.bf16.msra.mxu0 %v610
        %628 = vmatprep.subr.bf16.mxu0 0
        %629 = vmatpush2.bf16.msra.mxu0 0
        %630 = vmatprep.subr.bf16.mxu0 0
        %631 = vmatpush2.bf16.msra.mxu0 0
        %632 = vmatprep.subr.bf16.mxu0 0
        %633 = vmatpush2.bf16.msra.mxu0 0
        %634 = vmatprep.subr.bf16.mxu0 0
        %635 = vmatpush2.bf16.msra.mxu0 0
        %636 = vmatprep.subr.bf16.mxu0 0
        %637 = vmatpush2.bf16.msra.mxu0 0
        %638 = vmatprep.subr.bf16.mxu0 0
        %639 = vmatpush2.bf16.msra.mxu0 0
        %640 = vmatprep.subr.bf16.mxu0 0
        %641 = vmatpush2.bf16.msra.mxu0 0
        %642 = vmatprep.subr.bf16.mxu0 0
        %643 = vmatpush2.bf16.msra.mxu0 0
        %644 = vmatprep.mubr.bf16.mxu0 0
        %645 = vmatmul.mubr.bf16.gmra.mxu0 %v607
        %v646 = vpop.f32.mrf.mxu0
        %v647 = vadd.f32 0.0, %v646
        %v648 = vpop.f32.mrf.mxu0
        %v649 = vpop.f32.mrf.mxu0
        %v650 = vpop.f32.mrf.mxu0
        %651 = vdwg.mxu0
        %v652 = vpack.c.bf16 %v647, %v647
        %vm653 = vcmask 60416
        %654 = vst.msk [vmem:[%s382] sm:$0xf] %vm653, %v652
        %s655 = sand.u32 %s192, 1
        %s656 = scalar_lea.sflag [#allocation4], %s655
        %s657 = sand.u32 %s192, 1
        %s658 = smul.addr %s657, 4
        %s659 = scalar_lea.vmem [#allocation10], %s658
        // Predicated region
        $region57: #{tpu_custom_call.1} parent=39 // pred_check
          %p660 = pneg %p202
        $region58: #{tpu_custom_call.1} parent=39 // pred_check_branch
          %662 = sbr.rel (%p660) target = $region60
        $region59: #{tpu_custom_call.1} parent=39 // pred_region
          %s664 = ssub.s32 64, 64
          %665 = vsyncadd %s656, %s664
          %s666 = sadd.s32 %s33, %s32
          %s667 = smul.addr %s31, 4
          %s668 = sadd.s32 %s666, %s667
          %s669 = smul.addr %s668, 64
          %s670 = scalar_lea.hbm %s5, %s669
          %s672 = sshll.u32 %s659, 4
          %s673 = int_to_ptr.vmem [resolvable:$true] %s672
          %675 = dma.vmem_to_hbm [thread:$0]  %s673, 64, %s670, %s656
        $region60: #{tpu_custom_call.1} parent=39 // pred_fallthru
          _
      $region40: #{tpu_custom_call.1} parent=5 // pred_fallthru
        _
      %p676 = scmp.le.s32.totalorder 2, %s21
      // Predicated region
      $region61: #{tpu_custom_call.1} parent=5 // pred_check
        %p677 = pneg %p676
      $region62: #{tpu_custom_call.1} parent=5 // pred_check_branch
        %679 = sbr.rel (%p677) target = $region64
      $region63: #{tpu_custom_call.1} parent=5 // pred_region
        %s680 = ssub.s32 %s21, 2
        // Predicated region
        $region65: #{tpu_custom_call.1} parent=63 // pred_check
          %p681 = pneg %p208
        $region66: #{tpu_custom_call.1} parent=63 // pred_check_branch
          %683 = sbr.rel (%p681) target = $region68
        $region67: #{tpu_custom_call.1} parent=63 // pred_region
          %s684 = sand.u32 %s193, 1
          %s685 = scalar_lea.sflag [#allocation4], %s684
          %s686 = sand.u32 %s193, 1
          %s687 = smul.addr %s686, 4
          %s688 = scalar_lea.vmem [#allocation10], %s687
          %689 = dma.done %s685, 64
        $region68: #{tpu_custom_call.1} parent=63 // pred_fallthru
          _
      $region64: #{tpu_custom_call.1} parent=5 // pred_fallthru
        _
    $region6: #{tpu_custom_call.1} parent=1 // loop_footer
      %s25 = sadd.s32 1, %s21
    $region7: #{tpu_custom_call.1} parent=1 // loop_footer_branch
      %20 = sbr.rel target = $region3
    $region8: #{tpu_custom_call.1} parent=1 // loop_exit
      _
    %690 = vsyncpa [#allocation3], 1
    %s691 = scalar_lea.sflag [#allocation3], 1
    %692 = vsyncpa %s691, 1
    %693 = vsyncpa [#allocation6], 1
    %s694 = scalar_lea.sflag [#allocation6], 1
    %695 = vsyncpa %s694, 1
    %696 = vsyncpa [#allocation9], 1
    %697 = vsyncpa [#allocation4], 1
    %s698 = scalar_lea.sflag [#allocation4], 1
    %699 = vsyncpa %s698, 1

</llo_original>
